<compile_context>
chip_gen: v5e
topology: v5e:2x2
jax: 0.10.0
libtpu: 0.0.40
codegen_flags: <defaults>
</compile_context>

<pallas_src>
import jax
import jax.numpy as jnp
import numpy as np
from jax.experimental import pallas as pl
from jax.experimental.pallas import tpu as pltpu

EMB_DIM = 768
H1 = 256
H2 = 128
NUM_CLASSES = 4
PAD_OUT = 128          # lane-padded logits width (one full lane group)
LN_EPS = 1e-5
TB_MAX = 256           # max batch tile (fills the MXU M dimension)


def _round_up(n, m):
    return ((n + m - 1) // m) * m


def _choose_tb(B):
    """Pick the batch tile.

    - Multiples of 16 keep bf16 sublane packing clean.
    - Small batches: one tile, minimal padding.
    - Mid batches: exactly two tiles so both v7x TensorCores get work.
    - Large batches: 256-row tiles (fills the MXU M dimension, many grid steps).
    """
    b = _round_up(max(B, 16), 16)
    if b <= 128:
        return b
    if b <= 2 * TB_MAX:
        return _round_up(b // 2, 16)
    return TB_MAX


def _fused_layernorm_relu(h, gamma, beta):
    """Single-pass LayerNorm (+ ReLU) in f32.

    One sum(h) and one sum(h*h) reduction; gamma is folded into the rsqrt scale so
    the normalize is a single multiply-add per element.
    """
    n = h.shape[-1]
    s = jnp.sum(h, axis=-1, keepdims=True)
    ss = jnp.sum(h * h, axis=-1, keepdims=True)
    mean = s * (1.0 / n)
    var = jnp.maximum(ss * (1.0 / n) - mean * mean, 0.0)
    scale = gamma * jax.lax.rsqrt(var + LN_EPS)          # (TB, H)
    y = h * scale + (beta - mean * scale)
    return jnp.maximum(y, 0.0)


def classifier_kernel(x_ref,
                      w1_ref, b1_ref, g1_ref, be1_ref,
                      w2_ref, b2_ref, g2_ref, be2_ref,
                      w3_ref, b3_ref,
                      out_ref):
    x = x_ref[...]                                                    # (TB, 768) bf16

    # ---- Linear(768 -> 256) + LayerNorm(256) + ReLU (f32 accumulate / f32 math) ----
    h = jnp.dot(x, w1_ref[...], preferred_element_type=jnp.float32) + b1_ref[...]
    h = _fused_layernorm_relu(h, g1_ref[...], be1_ref[...])
    # Dropout(0.3): identity at inference time.

    # ---- Linear(256 -> 128) + LayerNorm(128) + ReLU ----
    h = jnp.dot(h.astype(jnp.bfloat16), w2_ref[...],
                preferred_element_type=jnp.float32) + b2_ref[...]
    h = _fused_layernorm_relu(h, g2_ref[...], be2_ref[...])

    # ---- Linear(128 -> 4, lane-padded to 128) + softmax ----
    # Pad columns of w3 are zero and b3 is -1e30 there (added in f32), so
    # exp(pad - max) flushes to exactly 0 and the softmax ignores them.
    logits = jnp.dot(h.astype(jnp.bfloat16), w3_ref[...],
                     preferred_element_type=jnp.float32) + b3_ref[...]
    m = jnp.max(logits, axis=-1, keepdims=True)
    e = jnp.exp(logits - m)
    probs = e * pl.reciprocal(jnp.sum(e, axis=-1, keepdims=True), approx=True)
    out_ref[...] = probs.astype(out_ref.dtype)


def content_classifier_forward(x, params, out_dtype=jnp.bfloat16):
    """x: (B, EMB_DIM) float32 (or bf16).  Returns softmax probs (B, NUM_CLASSES)."""
    if x.ndim == 1:
        x = x[None, :]
    B = x.shape[0]
    assert x.shape[1] == EMB_DIM

    TB = _choose_tb(B)
    B_pad = _round_up(B, TB)

    # bf16 activation stream halves the dominant HBM read and feeds the MXU at its
    # native rate; accumulation / LN / softmax stay in f32 inside the kernel.
    x = x.astype(jnp.bfloat16)
    if B_pad != B:
        x = jnp.pad(x, ((0, B_pad - B), (0, 0)))

    (w1, b1, g1, be1, w2, b2, g2, be2, w3, b3) = params
    w1 = w1.astype(jnp.bfloat16)
    w2 = w2.astype(jnp.bfloat16)
    w3 = w3.astype(jnp.bfloat16)
    # Biases / gamma / beta (incl. the -1e30 pad bias in b3) stay f32.

    full = lambda shape: pl.BlockSpec(shape, lambda i: (0, 0))  # VMEM-resident param
    out_padded = pl.pallas_call(
        classifier_kernel,
        out_shape=jax.ShapeDtypeStruct((B_pad, PAD_OUT), out_dtype),
        grid_spec=pltpu.PrefetchScalarGridSpec(
            num_scalar_prefetch=0,
            grid=(B_pad // TB,),
            in_specs=[
                pl.BlockSpec((TB, EMB_DIM), lambda i: (i, 0)),   # x tile
                full((EMB_DIM, H1)), full((1, H1)), full((1, H1)), full((1, H1)),
                full((H1, H2)),      full((1, H2)), full((1, H2)), full((1, H2)),
                full((H2, PAD_OUT)), full((1, PAD_OUT)),
            ],
            out_specs=pl.BlockSpec((TB, PAD_OUT), lambda i: (i, 0)),
        ),
        compiler_params=pltpu.CompilerParams(
            dimension_semantics=("parallel",)),
    )(x, w1, b1, g1, be1, w2, b2, g2, be2, w3, b3)

    # Consumers that can read the padded (B_pad, 128) buffer (or fuse argmax) can
    # skip this extra slice pass.
    return out_padded[:B, :NUM_CLASSES]


def init_params(key):
    """Deterministic synthetic parameters (weights pre-transposed to (in, out))."""
    ks = jax.random.split(key, 3)

    def lin(k, fan_in, fan_out):
        kw, kb = jax.random.split(k)
        bound = 1.0 / np.sqrt(fan_in)
        w = jax.random.uniform(kw, (fan_in, fan_out), jnp.float32, -bound, bound)
        b = jax.random.uniform(kb, (1, fan_out), jnp.float32, -bound, bound)
        return w, b

    w1, b1 = lin(ks[0], EMB_DIM, H1)
    g1 = jnp.ones((1, H1), jnp.float32)
    be1 = jnp.zeros((1, H1), jnp.float32)

    w2, b2 = lin(ks[1], H1, H2)
    g2 = jnp.ones((1, H2), jnp.float32)
    be2 = jnp.zeros((1, H2), jnp.float32)

    w3_real, b3_real = lin(ks[2], H2, NUM_CLASSES)
    # Lane-pad the final projection: zero weights, -1e30 bias for padded columns.
    w3 = jnp.zeros((H2, PAD_OUT), jnp.float32).at[:, :NUM_CLASSES].set(w3_real)
    b3 = jnp.full((1, PAD_OUT), -1e30, jnp.float32).at[:, :NUM_CLASSES].set(b3_real)

    return (w1, b1, g1, be1, w2, b2, g2, be2, w3, b3)


def reference_forward(x, params):
    """Plain-JAX reference using the same bf16-input / f32-accumulate precision."""
    (w1, b1, g1, be1, w2, b2, g2, be2, w3, b3) = params
    xb = x.astype(jnp.bfloat16)
    w1b, w2b, w3b = (w.astype(jnp.bfloat16) for w in (w1, w2, w3))

    def ln(h, g, b):
        mu = jnp.mean(h, axis=-1, keepdims=True)
        var = jnp.mean((h - mu) ** 2, axis=-1, keepdims=True)
        return (h - mu) / jnp.sqrt(var + LN_EPS) * g + b

    h = jnp.maximum(
        ln(jnp.dot(xb, w1b, preferred_element_type=jnp.float32) + b1, g1, be1), 0.0)
    h = jnp.maximum(
        ln(jnp.dot(h.astype(jnp.bfloat16), w2b, preferred_element_type=jnp.float32) + b2,
           g2, be2), 0.0)
    logits = (jnp.dot(h.astype(jnp.bfloat16), w3b[:, :NUM_CLASSES],
                      preferred_element_type=jnp.float32) + b3[:, :NUM_CLASSES])
    return jax.nn.softmax(logits, axis=1)


if __name__ == "__main__":
    key = jax.random.PRNGKey(0)
    k_param, k_x = jax.random.split(key)
    params = init_params(k_param)

    # Small batch (API sanity, single small tile) + a larger batch that exercises
    # the multi-tile path (TB=256, two grid steps -> both TensorCores on v7x).
    for B in (8, 512):
        x = jax.random.normal(jax.random.fold_in(k_x, B), (B, EMB_DIM), jnp.float32)

        probs = content_classifier_forward(x, params)
        probs = jax.block_until_ready(probs)
        probs_f32 = np.asarray(probs.astype(jnp.float32))

        ref = np.asarray(reference_forward(x, params))
        # bf16 output quantization + approx reciprocal + MXU accumulation-order
        # differences -> loose atol.
        np.testing.assert_allclose(probs_f32, ref, rtol=0.0, atol=2e-2)
        # Sanity: rows sum to ~1 and shape matches the PyTorch module output.
        assert probs_f32.shape == (B, NUM_CLASSES)
        np.testing.assert_allclose(probs_f32.sum(axis=1), np.ones(B), rtol=0.0, atol=2e-2)

    print("KERNEL_OK")
</pallas_src>

<mosaic_0001>
module attributes {stable_mosaic.version = 11 : i64} {
  func.func @classifier_kernel(%arg0: i32, %arg1: memref<16x768xbf16, #tpu.memory_space<vmem>>, %arg2: memref<768x256xbf16, #tpu.memory_space<vmem>>, %arg3: memref<1x256xf32, #tpu.memory_space<vmem>>, %arg4: memref<1x256xf32, #tpu.memory_space<vmem>>, %arg5: memref<1x256xf32, #tpu.memory_space<vmem>>, %arg6: memref<256x128xbf16, #tpu.memory_space<vmem>>, %arg7: memref<1x128xf32, #tpu.memory_space<vmem>>, %arg8: memref<1x128xf32, #tpu.memory_space<vmem>>, %arg9: memref<1x128xf32, #tpu.memory_space<vmem>>, %arg10: memref<128x128xbf16, #tpu.memory_space<vmem>>, %arg11: memref<1x128xf32, #tpu.memory_space<vmem>>, %arg12: memref<16x128xbf16, #tpu.memory_space<vmem>>) attributes {dimension_semantics = [#tpu.dimension_semantics<parallel>], iteration_bounds = array<i64: 1>, scalar_prefetch = 0 : i64, scratch_operands = 0 : i64, tpu.core_type = #tpu.core_type<tc>, window_params = [{transform_indices = @transform_0, window_bounds = array<i64: 16, 768>}, {pipeline_mode = #tpu.pipeline_mode<synchronous>, transform_indices = @transform_1, window_bounds = array<i64: 768, 256>}, {pipeline_mode = #tpu.pipeline_mode<synchronous>, transform_indices = @transform_2, window_bounds = array<i64: 1, 256>}, {pipeline_mode = #tpu.pipeline_mode<synchronous>, transform_indices = @transform_3, window_bounds = array<i64: 1, 256>}, {pipeline_mode = #tpu.pipeline_mode<synchronous>, transform_indices = @transform_4, window_bounds = array<i64: 1, 256>}, {pipeline_mode = #tpu.pipeline_mode<synchronous>, transform_indices = @transform_5, window_bounds = array<i64: 256, 128>}, {pipeline_mode = #tpu.pipeline_mode<synchronous>, transform_indices = @transform_6, window_bounds = array<i64: 1, 128>}, {pipeline_mode = #tpu.pipeline_mode<synchronous>, transform_indices = @transform_7, window_bounds = array<i64: 1, 128>}, {pipeline_mode = #tpu.pipeline_mode<synchronous>, transform_indices = @transform_8, window_bounds = array<i64: 1, 128>}, {pipeline_mode = #tpu.pipeline_mode<synchronous>, transform_indices = @transform_9, window_bounds = array<i64: 128, 128>}, {pipeline_mode = #tpu.pipeline_mode<synchronous>, transform_indices = @transform_10, window_bounds = array<i64: 1, 128>}, {transform_indices = @transform_11, window_bounds = array<i64: 16, 128>}]} {
    %c0 = arith.constant 0 : index
    %c0_0 = arith.constant 0 : index
    %0 = vector.load %arg1[%c0, %c0_0] : memref<16x768xbf16, #tpu.memory_space<vmem>>, vector<16x768xbf16>
    %c0_1 = arith.constant 0 : index
    %c0_2 = arith.constant 0 : index
    %1 = vector.load %arg2[%c0_1, %c0_2] : memref<768x256xbf16, #tpu.memory_space<vmem>>, vector<768x256xbf16>
    %cst = arith.constant dense<0.000000e+00> : vector<16x256xf32>
    %2 = tpu.matmul %0, %1, %cst {dimension_numbers = #tpu.dot_dimension_numbers<[1], [0], [0], [1], [0, 0, 1, 1], [], []>} : vector<16x768xbf16>, vector<768x256xbf16>, vector<16x256xf32> -> vector<16x256xf32>
    %c0_3 = arith.constant 0 : index
    %c0_4 = arith.constant 0 : index
    %3 = vector.load %arg3[%c0_3, %c0_4] : memref<1x256xf32, #tpu.memory_space<vmem>>, vector<1x256xf32>
    %4 = vector.broadcast %3 : vector<1x256xf32> to vector<16x256xf32>
    %5 = arith.addf %2, %4 : vector<16x256xf32>
    %c0_5 = arith.constant 0 : index
    %c0_6 = arith.constant 0 : index
    %6 = vector.load %arg4[%c0_5, %c0_6] : memref<1x256xf32, #tpu.memory_space<vmem>>, vector<1x256xf32>
    %c0_7 = arith.constant 0 : index
    %c0_8 = arith.constant 0 : index
    %7 = vector.load %arg5[%c0_7, %c0_8] : memref<1x256xf32, #tpu.memory_space<vmem>>, vector<1x256xf32>
    %cst_9 = arith.constant dense<0.000000e+00> : vector<16xf32>
    %8 = vector.multi_reduction <add>, %5, %cst_9 [1] : vector<16x256xf32> to vector<16xf32>
    %9 = vector.shape_cast %8 : vector<16xf32> to vector<16x1xf32>
    %10 = arith.mulf %5, %5 : vector<16x256xf32>
    %cst_10 = arith.constant dense<0.000000e+00> : vector<16xf32>
    %11 = vector.multi_reduction <add>, %10, %cst_10 [1] : vector<16x256xf32> to vector<16xf32>
    %12 = vector.shape_cast %11 : vector<16xf32> to vector<16x1xf32>
    %cst_11 = arith.constant 3.906250e-03 : f32
    %13 = vector.broadcast %cst_11 : f32 to vector<16x1xf32>
    %14 = arith.mulf %9, %13 : vector<16x1xf32>
    %cst_12 = arith.constant 3.906250e-03 : f32
    %15 = vector.broadcast %cst_12 : f32 to vector<16x1xf32>
    %16 = arith.mulf %12, %15 : vector<16x1xf32>
    %17 = arith.mulf %14, %14 : vector<16x1xf32>
    %18 = arith.subf %16, %17 : vector<16x1xf32>
    %cst_13 = arith.constant 0.000000e+00 : f32
    %19 = vector.broadcast %cst_13 : f32 to vector<16x1xf32>
    %20 = arith.maximumf %18, %19 : vector<16x1xf32>
    %cst_14 = arith.constant 9.99999974E-6 : f32
    %21 = vector.broadcast %cst_14 : f32 to vector<16x1xf32>
    %22 = arith.addf %20, %21 : vector<16x1xf32>
    %23 = math.rsqrt %22 : vector<16x1xf32>
    %24 = vector.broadcast %6 : vector<1x256xf32> to vector<16x256xf32>
    %25 = vector.broadcast %23 : vector<16x1xf32> to vector<16x256xf32>
    %26 = arith.mulf %24, %25 : vector<16x256xf32>
    %27 = arith.mulf %5, %26 : vector<16x256xf32>
    %28 = vector.broadcast %14 : vector<16x1xf32> to vector<16x256xf32>
    %29 = arith.mulf %28, %26 : vector<16x256xf32>
    %30 = vector.broadcast %7 : vector<1x256xf32> to vector<16x256xf32>
    %31 = arith.subf %30, %29 : vector<16x256xf32>
    %32 = arith.addf %27, %31 : vector<16x256xf32>
    %cst_15 = arith.constant 0.000000e+00 : f32
    %33 = vector.broadcast %cst_15 : f32 to vector<16x256xf32>
    %34 = arith.maximumf %32, %33 : vector<16x256xf32>
    %35 = arith.truncf %34 : vector<16x256xf32> to vector<16x256xbf16>
    %c0_16 = arith.constant 0 : index
    %c0_17 = arith.constant 0 : index
    %36 = vector.load %arg6[%c0_16, %c0_17] : memref<256x128xbf16, #tpu.memory_space<vmem>>, vector<256x128xbf16>
    %cst_18 = arith.constant dense<0.000000e+00> : vector<16x128xf32>
    %37 = tpu.matmul %35, %36, %cst_18 {dimension_numbers = #tpu.dot_dimension_numbers<[1], [0], [0], [1], [0, 0, 1, 1], [], []>} : vector<16x256xbf16>, vector<256x128xbf16>, vector<16x128xf32> -> vector<16x128xf32>
    %c0_19 = arith.constant 0 : index
    %c0_20 = arith.constant 0 : index
    %38 = vector.load %arg7[%c0_19, %c0_20] : memref<1x128xf32, #tpu.memory_space<vmem>>, vector<1x128xf32>
    %39 = vector.broadcast %38 : vector<1x128xf32> to vector<16x128xf32>
    %40 = arith.addf %37, %39 : vector<16x128xf32>
    %c0_21 = arith.constant 0 : index
    %c0_22 = arith.constant 0 : index
    %41 = vector.load %arg8[%c0_21, %c0_22] : memref<1x128xf32, #tpu.memory_space<vmem>>, vector<1x128xf32>
    %c0_23 = arith.constant 0 : index
    %c0_24 = arith.constant 0 : index
    %42 = vector.load %arg9[%c0_23, %c0_24] : memref<1x128xf32, #tpu.memory_space<vmem>>, vector<1x128xf32>
    %cst_25 = arith.constant dense<0.000000e+00> : vector<16xf32>
    %43 = vector.multi_reduction <add>, %40, %cst_25 [1] : vector<16x128xf32> to vector<16xf32>
    %44 = vector.shape_cast %43 : vector<16xf32> to vector<16x1xf32>
    %45 = arith.mulf %40, %40 : vector<16x128xf32>
    %cst_26 = arith.constant dense<0.000000e+00> : vector<16xf32>
    %46 = vector.multi_reduction <add>, %45, %cst_26 [1] : vector<16x128xf32> to vector<16xf32>
    %47 = vector.shape_cast %46 : vector<16xf32> to vector<16x1xf32>
    %cst_27 = arith.constant 7.812500e-03 : f32
    %48 = vector.broadcast %cst_27 : f32 to vector<16x1xf32>
    %49 = arith.mulf %44, %48 : vector<16x1xf32>
    %cst_28 = arith.constant 7.812500e-03 : f32
    %50 = vector.broadcast %cst_28 : f32 to vector<16x1xf32>
    %51 = arith.mulf %47, %50 : vector<16x1xf32>
    %52 = arith.mulf %49, %49 : vector<16x1xf32>
    %53 = arith.subf %51, %52 : vector<16x1xf32>
    %cst_29 = arith.constant 0.000000e+00 : f32
    %54 = vector.broadcast %cst_29 : f32 to vector<16x1xf32>
    %55 = arith.maximumf %53, %54 : vector<16x1xf32>
    %cst_30 = arith.constant 9.99999974E-6 : f32
    %56 = vector.broadcast %cst_30 : f32 to vector<16x1xf32>
    %57 = arith.addf %55, %56 : vector<16x1xf32>
    %58 = math.rsqrt %57 : vector<16x1xf32>
    %59 = vector.broadcast %41 : vector<1x128xf32> to vector<16x128xf32>
    %60 = vector.broadcast %58 : vector<16x1xf32> to vector<16x128xf32>
    %61 = arith.mulf %59, %60 : vector<16x128xf32>
    %62 = arith.mulf %40, %61 : vector<16x128xf32>
    %63 = vector.broadcast %49 : vector<16x1xf32> to vector<16x128xf32>
    %64 = arith.mulf %63, %61 : vector<16x128xf32>
    %65 = vector.broadcast %42 : vector<1x128xf32> to vector<16x128xf32>
    %66 = arith.subf %65, %64 : vector<16x128xf32>
    %67 = arith.addf %62, %66 : vector<16x128xf32>
    %cst_31 = arith.constant 0.000000e+00 : f32
    %68 = vector.broadcast %cst_31 : f32 to vector<16x128xf32>
    %69 = arith.maximumf %67, %68 : vector<16x128xf32>
    %70 = arith.truncf %69 : vector<16x128xf32> to vector<16x128xbf16>
    %c0_32 = arith.constant 0 : index
    %c0_33 = arith.constant 0 : index
    %71 = vector.load %arg10[%c0_32, %c0_33] : memref<128x128xbf16, #tpu.memory_space<vmem>>, vector<128x128xbf16>
    %cst_34 = arith.constant dense<0.000000e+00> : vector<16x128xf32>
    %72 = tpu.matmul %70, %71, %cst_34 {dimension_numbers = #tpu.dot_dimension_numbers<[1], [0], [0], [1], [0, 0, 1, 1], [], []>} : vector<16x128xbf16>, vector<128x128xbf16>, vector<16x128xf32> -> vector<16x128xf32>
    %c0_35 = arith.constant 0 : index
    %c0_36 = arith.constant 0 : index
    %73 = vector.load %arg11[%c0_35, %c0_36] : memref<1x128xf32, #tpu.memory_space<vmem>>, vector<1x128xf32>
    %74 = vector.broadcast %73 : vector<1x128xf32> to vector<16x128xf32>
    %75 = arith.addf %72, %74 : vector<16x128xf32>
    %cst_37 = arith.constant dense<0xFF800000> : vector<16xf32>
    %76 = vector.multi_reduction <maximumf>, %75, %cst_37 [1] : vector<16x128xf32> to vector<16xf32>
    %77 = vector.shape_cast %76 : vector<16xf32> to vector<16x1xf32>
    %78 = vector.broadcast %77 : vector<16x1xf32> to vector<16x128xf32>
    %79 = arith.subf %75, %78 : vector<16x128xf32>
    %80 = math.exp %79 : vector<16x128xf32>
    %cst_38 = arith.constant dense<0.000000e+00> : vector<16xf32>
    %81 = vector.multi_reduction <add>, %80, %cst_38 [1] : vector<16x128xf32> to vector<16xf32>
    %82 = vector.shape_cast %81 : vector<16xf32> to vector<16x1xf32>
    %83 = tpu.reciprocal %82 {approx = true} : vector<16x1xf32> -> vector<16x1xf32>
    %84 = vector.broadcast %83 : vector<16x1xf32> to vector<16x128xf32>
    %85 = arith.mulf %80, %84 : vector<16x128xf32>
    %86 = arith.truncf %85 : vector<16x128xf32> to vector<16x128xbf16>
    %c0_39 = arith.constant 0 : index
    %c0_40 = arith.constant 0 : index
    %87 = vector.load %arg12[%c0_39, %c0_40] : memref<16x128xbf16, #tpu.memory_space<vmem>>, vector<16x128xbf16>
    tpu.vector_store %arg12[%c0_39, %c0_40], %86 {strides = array<i32>} : memref<16x128xbf16, #tpu.memory_space<vmem>>, vector<16x128xbf16>,
    return
  }
  func.func @transform_0(%arg0: i32) -> (i32, i32) {
    %c0_i32 = arith.constant 0 : i32
    %c0_i32_0 = arith.constant 0 : i32
    return %arg0, %c0_i32 : i32, i32
  }
  func.func @transform_1(%arg0: i32) -> (i32, i32) {
    %c0_i32 = arith.constant 0 : i32
    %c0_i32_0 = arith.constant 0 : i32
    %c0_i32_1 = arith.constant 0 : i32
    return %c0_i32, %c0_i32_0 : i32, i32
  }
  func.func @transform_2(%arg0: i32) -> (i32, i32) {
    %c0_i32 = arith.constant 0 : i32
    %c0_i32_0 = arith.constant 0 : i32
    %c0_i32_1 = arith.constant 0 : i32
    return %c0_i32, %c0_i32_0 : i32, i32
  }
  func.func @transform_3(%arg0: i32) -> (i32, i32) {
    %c0_i32 = arith.constant 0 : i32
    %c0_i32_0 = arith.constant 0 : i32
    %c0_i32_1 = arith.constant 0 : i32
    return %c0_i32, %c0_i32_0 : i32, i32
  }
  func.func @transform_4(%arg0: i32) -> (i32, i32) {
    %c0_i32 = arith.constant 0 : i32
    %c0_i32_0 = arith.constant 0 : i32
    %c0_i32_1 = arith.constant 0 : i32
    return %c0_i32, %c0_i32_0 : i32, i32
  }
  func.func @transform_5(%arg0: i32) -> (i32, i32) {
    %c0_i32 = arith.constant 0 : i32
    %c0_i32_0 = arith.constant 0 : i32
    %c0_i32_1 = arith.constant 0 : i32
    return %c0_i32, %c0_i32_0 : i32, i32
  }
  func.func @transform_6(%arg0: i32) -> (i32, i32) {
    %c0_i32 = arith.constant 0 : i32
    %c0_i32_0 = arith.constant 0 : i32
    %c0_i32_1 = arith.constant 0 : i32
    return %c0_i32, %c0_i32_0 : i32, i32
  }
  func.func @transform_7(%arg0: i32) -> (i32, i32) {
    %c0_i32 = arith.constant 0 : i32
    %c0_i32_0 = arith.constant 0 : i32
    %c0_i32_1 = arith.constant 0 : i32
    return %c0_i32, %c0_i32_0 : i32, i32
  }
  func.func @transform_8(%arg0: i32) -> (i32, i32) {
    %c0_i32 = arith.constant 0 : i32
    %c0_i32_0 = arith.constant 0 : i32
    %c0_i32_1 = arith.constant 0 : i32
    return %c0_i32, %c0_i32_0 : i32, i32
  }
  func.func @transform_9(%arg0: i32) -> (i32, i32) {
    %c0_i32 = arith.constant 0 : i32
    %c0_i32_0 = arith.constant 0 : i32
    %c0_i32_1 = arith.constant 0 : i32
    return %c0_i32, %c0_i32_0 : i32, i32
  }
  func.func @transform_10(%arg0: i32) -> (i32, i32) {
    %c0_i32 = arith.constant 0 : i32
    %c0_i32_0 = arith.constant 0 : i32
    %c0_i32_1 = arith.constant 0 : i32
    return %c0_i32, %c0_i32_0 : i32, i32
  }
  func.func @transform_11(%arg0: i32) -> (i32, i32) {
    %c0_i32 = arith.constant 0 : i32
    %c0_i32_0 = arith.constant 0 : i32
    return %arg0, %c0_i32 : i32, i32
  }
}

</mosaic_0001>

<llo_original>
// kernel: tpu_custom_call.1
$region0: #{tpu_custom_call.1}
  #allocation0 [shape = 'u32[]', space=smem, size = 0x4, offset = 0x4, fixed_abs, tag = 'smem constant byte address 0x4 - core index']
  #allocation1 [shape = 'u32[72,128]{1,0:T(1,128)}', space=vmem, size = 0x9000, scoped, tag = 'internal scratch']
  %s0 = inlined_call_operand.hbm [shape: bf16[16,768], index: 0, kind: input, shape index: {}]
  %s1 = inlined_call_operand.hbm [shape: bf16[768,256], index: 1, kind: input, shape index: {}]
  %s2 = inlined_call_operand.hbm [shape: f32[1,256], index: 2, kind: input, shape index: {}]
  %s3 = inlined_call_operand.vmem [shape: f32[1,256], index: 3, kind: input, shape index: {}]
  %s4 = inlined_call_operand.hbm [shape: f32[1,256], index: 4, kind: input, shape index: {}]
  %s5 = inlined_call_operand.hbm [shape: bf16[256,128], index: 5, kind: input, shape index: {}]
  %s6 = inlined_call_operand.vmem [shape: f32[1,128], index: 6, kind: input, shape index: {}]
  %s7 = inlined_call_operand.vmem [shape: f32[1,128], index: 7, kind: input, shape index: {}]
  %s8 = inlined_call_operand.vmem [shape: f32[1,128], index: 8, kind: input, shape index: {}]
  %s9 = inlined_call_operand.hbm [shape: bf16[128,128], index: 9, kind: input, shape index: {}]
  %s10 = inlined_call_operand.vmem [shape: f32[1,128], index: 10, kind: input, shape index: {}]
  %s11 = inlined_call_operand.hbm [shape: bf16[16,128], index: 11, kind: output, shape index: {}]
  %s12 = sld [smem:[#allocation0]]
  $region78: #{tpu_custom_call.1} parent=0
    _
  %s14 = ssub.s32 1, %s12
  %s15 = scalar_select 0, %s14, %s12
  $region1: #{tpu_custom_call.1} parent=0
    #allocation2 [shape = 'u8[24576]{0}', space=vmem, size = 0x6000, scoped, tag = 'input window, operand 0, single buffered']
    #allocation3 [shape = 's32[1]{0}', space=sflag, size = 0x4, scoped, tag = 'scoped memory for tpu_custom_call.1']
    #allocation4 [shape = 's32[1]{0}', space=sflag, size = 0x4, scoped, tag = 'scoped memory for tpu_custom_call.1']
    #allocation5 [shape = 'u8[393216]{0}', space=vmem, size = 0x60000, scoped, tag = 'input window, operand 1, single buffered']
    #allocation6 [shape = 's32[1]{0}', space=sflag, size = 0x4, scoped, tag = 'scoped memory for tpu_custom_call.1']
    #allocation7 [shape = 'u8[1024]{0}', space=vmem, size = 0x400, scoped, tag = 'input window, operand 2, single buffered']
    #allocation8 [shape = 'u8[1024]{0}', space=vmem, size = 0x400, scoped, tag = 'input window, operand 4, single buffered']
    #allocation9 [shape = 's32[1]{0}', space=sflag, size = 0x4, scoped, tag = 'scoped memory for tpu_custom_call.1']
    #allocation10 [shape = 'u8[65536]{0}', space=vmem, size = 0x10000, scoped, tag = 'input window, operand 5, single buffered']
    #allocation11 [shape = 'u8[32768]{0}', space=vmem, size = 0x8000, scoped, tag = 'input window, operand 9, single buffered']
    #allocation12 [shape = 's32[1]{0}', space=sflag, size = 0x4, scoped, tag = 'scoped memory for tpu_custom_call.1']
    #allocation13 [shape = 'u8[4096]{0}', space=vmem, size = 0x1000, scoped, tag = 'output window, operand 0, single buffered']
    %16 = vsyncpa [#allocation3], 0
    %17 = vsyncpa [#allocation6], 0
    %18 = vsyncpa [#allocation9], 0
    %19 = vsyncpa [#allocation12], 0
    %20 = vsyncpa [#allocation4], 0
    // Predicated region
    $region2: #{tpu_custom_call.1} parent=1 // pred_check
      _
    $region3: #{tpu_custom_call.1} parent=1 // pred_check_branch
      %22 = sbr.rel (0) target = $region5
    $region4: #{tpu_custom_call.1} parent=1 // pred_region
      %24 = vsyncadd [#allocation3], 0
      %s25 = sshll.u32 %s0, 4
      %s26 = int_to_ptr.hbm [resolvable:$true] %s25
      %s27 = sshll.u32 [#allocation2], 4
      %s28 = int_to_ptr.vmem [resolvable:$true] %s27
      %33 = dma.hbm_to_vmem [thread:$0]  %s26, 768, %s28, [#allocation3], 384, 384, 24
    $region5: #{tpu_custom_call.1} parent=1 // pred_fallthru
      _
    // Predicated region
    $region6: #{tpu_custom_call.1} parent=1 // pred_check
      _
    $region7: #{tpu_custom_call.1} parent=1 // pred_check_branch
      %35 = sbr.rel (0) target = $region9
    $region8: #{tpu_custom_call.1} parent=1 // pred_region
      %37 = vsyncadd [#allocation6], 0
      %s38 = sshll.u32 %s1, 4
      %s39 = int_to_ptr.hbm [resolvable:$true] %s38
      %s40 = sshll.u32 [#allocation5], 4
      %s41 = int_to_ptr.vmem [resolvable:$true] %s40
      %46 = dma.hbm_to_vmem [thread:$0]  %s39, 12288, %s41, [#allocation6], 128, 128, 8
    $region9: #{tpu_custom_call.1} parent=1 // pred_fallthru
      _
    // Predicated region
    $region10: #{tpu_custom_call.1} parent=1 // pred_check
      _
    $region11: #{tpu_custom_call.1} parent=1 // pred_check_branch
      %48 = sbr.rel (0) target = $region13
    $region12: #{tpu_custom_call.1} parent=1 // pred_region
      %50 = vsyncadd [#allocation6], 0
      %s52 = sshll.u32 %s2, 4
      %s53 = int_to_ptr.hbm [resolvable:$true] %s52
      %s54 = sshll.u32 [#allocation7], 4
      %s55 = int_to_ptr.vmem [resolvable:$true] %s54
      %57 = dma.hbm_to_vmem [thread:$0]  %s53, 32, %s55, [#allocation6]
    $region13: #{tpu_custom_call.1} parent=1 // pred_fallthru
      _
    // Predicated region
    $region14: #{tpu_custom_call.1} parent=1 // pred_check
      _
    $region15: #{tpu_custom_call.1} parent=1 // pred_check_branch
      %59 = sbr.rel (0) target = $region17
    $region16: #{tpu_custom_call.1} parent=1 // pred_region
      _
    $region17: #{tpu_custom_call.1} parent=1 // pred_fallthru
      _
    // Predicated region
    $region18: #{tpu_custom_call.1} parent=1 // pred_check
      _
    $region19: #{tpu_custom_call.1} parent=1 // pred_check_branch
      %61 = sbr.rel (0) target = $region21
    $region20: #{tpu_custom_call.1} parent=1 // pred_region
      %63 = vsyncadd [#allocation9], 0
      %s65 = sshll.u32 %s4, 4
      %s66 = int_to_ptr.hbm [resolvable:$true] %s65
      %s67 = sshll.u32 [#allocation8], 4
      %s68 = int_to_ptr.vmem [resolvable:$true] %s67
      %70 = dma.hbm_to_vmem [thread:$0]  %s66, 32, %s68, [#allocation9]
    $region21: #{tpu_custom_call.1} parent=1 // pred_fallthru
      _
    // Predicated region
    $region22: #{tpu_custom_call.1} parent=1 // pred_check
      _
    $region23: #{tpu_custom_call.1} parent=1 // pred_check_branch
      %72 = sbr.rel (0) target = $region25
    $region24: #{tpu_custom_call.1} parent=1 // pred_region
      %74 = vsyncadd [#allocation9], 0
      %s75 = sshll.u32 %s5, 4
      %s76 = int_to_ptr.hbm [resolvable:$true] %s75
      %s77 = sshll.u32 [#allocation10], 4
      %s78 = int_to_ptr.vmem [resolvable:$true] %s77
      %83 = dma.hbm_to_vmem [thread:$0]  %s76, 2048, %s78, [#allocation9], 64, 64, 4
    $region25: #{tpu_custom_call.1} parent=1 // pred_fallthru
      _
    // Predicated region
    $region26: #{tpu_custom_call.1} parent=1 // pred_check
      _
    $region27: #{tpu_custom_call.1} parent=1 // pred_check_branch
      %85 = sbr.rel (0) target = $region29
    $region28: #{tpu_custom_call.1} parent=1 // pred_region
      _
    $region29: #{tpu_custom_call.1} parent=1 // pred_fallthru
      _
    // Predicated region
    $region30: #{tpu_custom_call.1} parent=1 // pred_check
      _
    $region31: #{tpu_custom_call.1} parent=1 // pred_check_branch
      %87 = sbr.rel (0) target = $region33
    $region32: #{tpu_custom_call.1} parent=1 // pred_region
      _
    $region33: #{tpu_custom_call.1} parent=1 // pred_fallthru
      _
    // Predicated region
    $region34: #{tpu_custom_call.1} parent=1 // pred_check
      _
    $region35: #{tpu_custom_call.1} parent=1 // pred_check_branch
      %89 = sbr.rel (0) target = $region37
    $region36: #{tpu_custom_call.1} parent=1 // pred_region
      _
    $region37: #{tpu_custom_call.1} parent=1 // pred_fallthru
      _
    // Predicated region
    $region38: #{tpu_custom_call.1} parent=1 // pred_check
      _
    $region39: #{tpu_custom_call.1} parent=1 // pred_check_branch
      %91 = sbr.rel (0) target = $region41
    $region40: #{tpu_custom_call.1} parent=1 // pred_region
      %93 = vsyncadd [#allocation12], 0
      %s94 = sshll.u32 %s9, 4
      %s95 = int_to_ptr.hbm [resolvable:$true] %s94
      %s96 = sshll.u32 [#allocation11], 4
      %s97 = int_to_ptr.vmem [resolvable:$true] %s96
      %102 = dma.hbm_to_vmem [thread:$0]  %s95, 1024, %s97, [#allocation12], 64, 64, 4
    $region41: #{tpu_custom_call.1} parent=1 // pred_fallthru
      _
    // Predicated region
    $region42: #{tpu_custom_call.1} parent=1 // pred_check
      _
    $region43: #{tpu_custom_call.1} parent=1 // pred_check_branch
      %104 = sbr.rel (0) target = $region45
    $region44: #{tpu_custom_call.1} parent=1 // pred_region
      _
    $region45: #{tpu_custom_call.1} parent=1 // pred_fallthru
      _
    // Predicated region
    $region46: #{tpu_custom_call.1} parent=1 // pred_check
      _
    $region47: #{tpu_custom_call.1} parent=1 // pred_check_branch
      %106 = sbr.rel (0) target = $region49
    $region48: #{tpu_custom_call.1} parent=1 // pred_region
      %108 = dma.done [#allocation3], 768
    $region49: #{tpu_custom_call.1} parent=1 // pred_fallthru
      _
    // Predicated region
    $region50: #{tpu_custom_call.1} parent=1 // pred_check
      _
    $region51: #{tpu_custom_call.1} parent=1 // pred_check_branch
      %110 = sbr.rel (0) target = $region53
    $region52: #{tpu_custom_call.1} parent=1 // pred_region
      %112 = dma.done [#allocation6], 12288
    $region53: #{tpu_custom_call.1} parent=1 // pred_fallthru
      _
    // Predicated region
    $region54: #{tpu_custom_call.1} parent=1 // pred_check
      _
    $region55: #{tpu_custom_call.1} parent=1 // pred_check_branch
      %114 = sbr.rel (0) target = $region57
    $region56: #{tpu_custom_call.1} parent=1 // pred_region
      %116 = dma.done [#allocation6], 32
    $region57: #{tpu_custom_call.1} parent=1 // pred_fallthru
      _
    // Predicated region
    $region58: #{tpu_custom_call.1} parent=1 // pred_check
      _
    $region59: #{tpu_custom_call.1} parent=1 // pred_check_branch
      %118 = sbr.rel (0) target = $region61
    $region60: #{tpu_custom_call.1} parent=1 // pred_region
      %120 = dma.done [#allocation9], 32
    $region61: #{tpu_custom_call.1} parent=1 // pred_fallthru
      _
    // Predicated region
    $region62: #{tpu_custom_call.1} parent=1 // pred_check
      _
    $region63: #{tpu_custom_call.1} parent=1 // pred_check_branch
      %122 = sbr.rel (0) target = $region65
    $region64: #{tpu_custom_call.1} parent=1 // pred_region
      %124 = dma.done [#allocation9], 2048
    $region65: #{tpu_custom_call.1} parent=1 // pred_fallthru
      _
    // Predicated region
    $region66: #{tpu_custom_call.1} parent=1 // pred_check
      _
    $region67: #{tpu_custom_call.1} parent=1 // pred_check_branch
      %126 = sbr.rel (0) target = $region69
    $region68: #{tpu_custom_call.1} parent=1 // pred_region
      %128 = dma.done [#allocation12], 1024
    $region69: #{tpu_custom_call.1} parent=1 // pred_fallthru
      _
    %v129 = vld [vmem:[#allocation2] sm:$0xff]
    %v130 = vld [vmem:[#allocation2 + $0x8] sm:$0xff]
    %v131 = vld [vmem:[#allocation2 + $0x10] sm:$0xff]
    %v132 = vld [vmem:[#allocation2 + $0x18] sm:$0xff]
    %v133 = vld [vmem:[#allocation2 + $0x20] sm:$0xff]
    %v134 = vld [vmem:[#allocation2 + $0x28] sm:$0xff]
    %v135 = vld [vmem:[#allocation5] sm:$0xff]
    %v136 = vld [vmem:[#allocation5 + $0x8] sm:$0xff]
    %v137 = vld [vmem:[#allocation5 + $0x10] sm:$0xff]
    %v138 = vld [vmem:[#allocation5 + $0x18] sm:$0xff]
    %v139 = vld [vmem:[#allocation5 + $0x20] sm:$0xff]
    %v140 = vld [vmem:[#allocation5 + $0x28] sm:$0xff]
    %v141 = vld [vmem:[#allocation5 + $0x30] sm:$0xff]
    %v142 = vld [vmem:[#allocation5 + $0x38] sm:$0xff]
    %v143 = vld [vmem:[#allocation5 + $0x40] sm:$0xff]
    %v144 = vld [vmem:[#allocation5 + $0x48] sm:$0xff]
    %v145 = vld [vmem:[#allocation5 + $0x50] sm:$0xff]
    %v146 = vld [vmem:[#allocation5 + $0x58] sm:$0xff]
    %v147 = vld [vmem:[#allocation5 + $0x60] sm:$0xff]
    %v148 = vld [vmem:[#allocation5 + $0x68] sm:$0xff]
    %v149 = vld [vmem:[#allocation5 + $0x70] sm:$0xff]
    %v150 = vld [vmem:[#allocation5 + $0x78] sm:$0xff]
    %v151 = vld [vmem:[#allocation5 + $0x80] sm:$0xff]
    %v152 = vld [vmem:[#allocation5 + $0x88] sm:$0xff]
    %v153 = vld [vmem:[#allocation5 + $0x90] sm:$0xff]
    %v154 = vld [vmem:[#allocation5 + $0x98] sm:$0xff]
    %v155 = vld [vmem:[#allocation5 + $0xa0] sm:$0xff]
    %v156 = vld [vmem:[#allocation5 + $0xa8] sm:$0xff]
    %v157 = vld [vmem:[#allocation5 + $0xb0] sm:$0xff]
    %v158 = vld [vmem:[#allocation5 + $0xb8] sm:$0xff]
    %v159 = vld [vmem:[#allocation5 + $0xc0] sm:$0xff]
    %v160 = vld [vmem:[#allocation5 + $0xc8] sm:$0xff]
    %v161 = vld [vmem:[#allocation5 + $0xd0] sm:$0xff]
    %v162 = vld [vmem:[#allocation5 + $0xd8] sm:$0xff]
    %v163 = vld [vmem:[#allocation5 + $0xe0] sm:$0xff]
    %v164 = vld [vmem:[#allocation5 + $0xe8] sm:$0xff]
    %v165 = vld [vmem:[#allocation5 + $0xf0] sm:$0xff]
    %v166 = vld [vmem:[#allocation5 + $0xf8] sm:$0xff]
    %v167 = vld [vmem:[#allocation5 + $0x100] sm:$0xff]
    %v168 = vld [vmem:[#allocation5 + $0x108] sm:$0xff]
    %v169 = vld [vmem:[#allocation5 + $0x110] sm:$0xff]
    %v170 = vld [vmem:[#allocation5 + $0x118] sm:$0xff]
    %v171 = vld [vmem:[#allocation5 + $0x120] sm:$0xff]
    %v172 = vld [vmem:[#allocation5 + $0x128] sm:$0xff]
    %v173 = vld [vmem:[#allocation5 + $0x130] sm:$0xff]
    %v174 = vld [vmem:[#allocation5 + $0x138] sm:$0xff]
    %v175 = vld [vmem:[#allocation5 + $0x140] sm:$0xff]
    %v176 = vld [vmem:[#allocation5 + $0x148] sm:$0xff]
    %v177 = vld [vmem:[#allocation5 + $0x150] sm:$0xff]
    %v178 = vld [vmem:[#allocation5 + $0x158] sm:$0xff]
    %v179 = vld [vmem:[#allocation5 + $0x160] sm:$0xff]
    %v180 = vld [vmem:[#allocation5 + $0x168] sm:$0xff]
    %v181 = vld [vmem:[#allocation5 + $0x170] sm:$0xff]
    %v182 = vld [vmem:[#allocation5 + $0x178] sm:$0xff]
    %v183 = vld [vmem:[#allocation5 + $0x180] sm:$0xff]
    %v184 = vld [vmem:[#allocation5 + $0x188] sm:$0xff]
    %v185 = vld [vmem:[#allocation5 + $0x190] sm:$0xff]
    %v186 = vld [vmem:[#allocation5 + $0x198] sm:$0xff]
    %v187 = vld [vmem:[#allocation5 + $0x1a0] sm:$0xff]
    %v188 = vld [vmem:[#allocation5 + $0x1a8] sm:$0xff]
    %v189 = vld [vmem:[#allocation5 + $0x1b0] sm:$0xff]
    %v190 = vld [vmem:[#allocation5 + $0x1b8] sm:$0xff]
    %v191 = vld [vmem:[#allocation5 + $0x1c0] sm:$0xff]
    %v192 = vld [vmem:[#allocation5 + $0x1c8] sm:$0xff]
    %v193 = vld [vmem:[#allocation5 + $0x1d0] sm:$0xff]
    %v194 = vld [vmem:[#allocation5 + $0x1d8] sm:$0xff]
    %v195 = vld [vmem:[#allocation5 + $0x1e0] sm:$0xff]
    %v196 = vld [vmem:[#allocation5 + $0x1e8] sm:$0xff]
    %v197 = vld [vmem:[#allocation5 + $0x1f0] sm:$0xff]
    %v198 = vld [vmem:[#allocation5 + $0x1f8] sm:$0xff]
    %v199 = vld [vmem:[#allocation5 + $0x200] sm:$0xff]
    %v200 = vld [vmem:[#allocation5 + $0x208] sm:$0xff]
    %v201 = vld [vmem:[#allocation5 + $0x210] sm:$0xff]
    %v202 = vld [vmem:[#allocation5 + $0x218] sm:$0xff]
    %v203 = vld [vmem:[#allocation5 + $0x220] sm:$0xff]
    %v204 = vld [vmem:[#allocation5 + $0x228] sm:$0xff]
    %v205 = vld [vmem:[#allocation5 + $0x230] sm:$0xff]
    %v206 = vld [vmem:[#allocation5 + $0x238] sm:$0xff]
    %v207 = vld [vmem:[#allocation5 + $0x240] sm:$0xff]
    %v208 = vld [vmem:[#allocation5 + $0x248] sm:$0xff]
    %v209 = vld [vmem:[#allocation5 + $0x250] sm:$0xff]
    %v210 = vld [vmem:[#allocation5 + $0x258] sm:$0xff]
    %v211 = vld [vmem:[#allocation5 + $0x260] sm:$0xff]
    %v212 = vld [vmem:[#allocation5 + $0x268] sm:$0xff]
    %v213 = vld [vmem:[#allocation5 + $0x270] sm:$0xff]
    %v214 = vld [vmem:[#allocation5 + $0x278] sm:$0xff]
    %v215 = vld [vmem:[#allocation5 + $0x280] sm:$0xff]
    %v216 = vld [vmem:[#allocation5 + $0x288] sm:$0xff]
    %v217 = vld [vmem:[#allocation5 + $0x290] sm:$0xff]
    %v218 = vld [vmem:[#allocation5 + $0x298] sm:$0xff]
    %v219 = vld [vmem:[#allocation5 + $0x2a0] sm:$0xff]
    %v220 = vld [vmem:[#allocation5 + $0x2a8] sm:$0xff]
    %v221 = vld [vmem:[#allocation5 + $0x2b0] sm:$0xff]
    %v222 = vld [vmem:[#allocation5 + $0x2b8] sm:$0xff]
    %v223 = vld [vmem:[#allocation5 + $0x2c0] sm:$0xff]
    %v224 = vld [vmem:[#allocation5 + $0x2c8] sm:$0xff]
    %v225 = vld [vmem:[#allocation5 + $0x2d0] sm:$0xff]
    %v226 = vld [vmem:[#allocation5 + $0x2d8] sm:$0xff]
    %v227 = vld [vmem:[#allocation5 + $0x2e0] sm:$0xff]
    %v228 = vld [vmem:[#allocation5 + $0x2e8] sm:$0xff]
    %v229 = vld [vmem:[#allocation5 + $0x2f0] sm:$0xff]
    %v230 = vld [vmem:[#allocation5 + $0x2f8] sm:$0xff]
    %v231 = vld [vmem:[#allocation7] sm:$0x3]
    %v233 = vperm.slane %v231, 0
    %v234 = vperm.slane %v231, 1
    %v243 = vunpack.c.l.b16 %v129
    %v244 = vunpack.c.h.b16 %v129
    %v245 = vunpack.c.l.b16 %v130
    %v246 = vunpack.c.h.b16 %v130
    %v247 = vunpack.c.l.b16 %v131
    %v248 = vunpack.c.h.b16 %v131
    %v249 = vunpack.c.l.b16 %v132
    %v250 = vunpack.c.h.b16 %v132
    %v251 = vunpack.c.l.b16 %v133
    %v252 = vunpack.c.h.b16 %v133
    %v253 = vunpack.c.l.b16 %v134
    %v254 = vunpack.c.h.b16 %v134
    %v255 = vpack.c.b16 %v249, %v243
    %v256 = vpack.c.b16 %v250, %v244
    %v257 = vpack.c.b16 %v251, %v245
    %v258 = vpack.c.b16 %v252, %v246
    %v259 = vpack.c.b16 %v253, %v247
    %v260 = vpack.c.b16 %v254, %v248
    %v363 = vunpack.c.l.b16 %v135
    %v364 = vunpack.c.h.b16 %v135
    %v365 = vunpack.c.l.b16 %v136
    %v366 = vunpack.c.h.b16 %v136
    %v367 = vunpack.c.l.b16 %v137
    %v368 = vunpack.c.h.b16 %v137
    %v369 = vunpack.c.l.b16 %v138
    %v370 = vunpack.c.h.b16 %v138
    %v371 = vunpack.c.l.b16 %v139
    %v372 = vunpack.c.h.b16 %v139
    %v373 = vunpack.c.l.b16 %v140
    %v374 = vunpack.c.h.b16 %v140
    %v375 = vunpack.c.l.b16 %v141
    %v376 = vunpack.c.h.b16 %v141
    %v377 = vunpack.c.l.b16 %v142
    %v378 = vunpack.c.h.b16 %v142
    %v379 = vunpack.c.l.b16 %v143
    %v380 = vunpack.c.h.b16 %v143
    %v381 = vunpack.c.l.b16 %v144
    %v382 = vunpack.c.h.b16 %v144
    %v383 = vunpack.c.l.b16 %v145
    %v384 = vunpack.c.h.b16 %v145
    %v385 = vunpack.c.l.b16 %v146
    %v386 = vunpack.c.h.b16 %v146
    %v387 = vunpack.c.l.b16 %v147
    %v388 = vunpack.c.h.b16 %v147
    %v389 = vunpack.c.l.b16 %v148
    %v390 = vunpack.c.h.b16 %v148
    %v391 = vunpack.c.l.b16 %v149
    %v392 = vunpack.c.h.b16 %v149
    %v393 = vunpack.c.l.b16 %v150
    %v394 = vunpack.c.h.b16 %v150
    %v395 = vunpack.c.l.b16 %v151
    %v396 = vunpack.c.h.b16 %v151
    %v397 = vunpack.c.l.b16 %v152
    %v398 = vunpack.c.h.b16 %v152
    %v399 = vunpack.c.l.b16 %v153
    %v400 = vunpack.c.h.b16 %v153
    %v401 = vunpack.c.l.b16 %v154
    %v402 = vunpack.c.h.b16 %v154
    %v403 = vunpack.c.l.b16 %v155
    %v404 = vunpack.c.h.b16 %v155
    %v405 = vunpack.c.l.b16 %v156
    %v406 = vunpack.c.h.b16 %v156
    %v407 = vunpack.c.l.b16 %v157
    %v408 = vunpack.c.h.b16 %v157
    %v409 = vunpack.c.l.b16 %v158
    %v410 = vunpack.c.h.b16 %v158
    %v411 = vunpack.c.l.b16 %v159
    %v412 = vunpack.c.h.b16 %v159
    %v413 = vunpack.c.l.b16 %v160
    %v414 = vunpack.c.h.b16 %v160
    %v415 = vunpack.c.l.b16 %v161
    %v416 = vunpack.c.h.b16 %v161
    %v417 = vunpack.c.l.b16 %v162
    %v418 = vunpack.c.h.b16 %v162
    %v419 = vunpack.c.l.b16 %v163
    %v420 = vunpack.c.h.b16 %v163
    %v421 = vunpack.c.l.b16 %v164
    %v422 = vunpack.c.h.b16 %v164
    %v423 = vunpack.c.l.b16 %v165
    %v424 = vunpack.c.h.b16 %v165
    %v425 = vunpack.c.l.b16 %v166
    %v426 = vunpack.c.h.b16 %v166
    %v427 = vunpack.c.l.b16 %v167
    %v428 = vunpack.c.h.b16 %v167
    %v429 = vunpack.c.l.b16 %v168
    %v430 = vunpack.c.h.b16 %v168
    %v431 = vunpack.c.l.b16 %v169
    %v432 = vunpack.c.h.b16 %v169
    %v433 = vunpack.c.l.b16 %v170
    %v434 = vunpack.c.h.b16 %v170
    %v435 = vunpack.c.l.b16 %v171
    %v436 = vunpack.c.h.b16 %v171
    %v437 = vunpack.c.l.b16 %v172
    %v438 = vunpack.c.h.b16 %v172
    %v439 = vunpack.c.l.b16 %v173
    %v440 = vunpack.c.h.b16 %v173
    %v441 = vunpack.c.l.b16 %v174
    %v442 = vunpack.c.h.b16 %v174
    %v443 = vunpack.c.l.b16 %v175
    %v444 = vunpack.c.h.b16 %v175
    %v445 = vunpack.c.l.b16 %v176
    %v446 = vunpack.c.h.b16 %v176
    %v447 = vunpack.c.l.b16 %v177
    %v448 = vunpack.c.h.b16 %v177
    %v449 = vunpack.c.l.b16 %v178
    %v450 = vunpack.c.h.b16 %v178
    %v451 = vunpack.c.l.b16 %v179
    %v452 = vunpack.c.h.b16 %v179
    %v453 = vunpack.c.l.b16 %v180
    %v454 = vunpack.c.h.b16 %v180
    %v455 = vunpack.c.l.b16 %v181
    %v456 = vunpack.c.h.b16 %v181
    %v457 = vunpack.c.l.b16 %v182
    %v458 = vunpack.c.h.b16 %v182
    %v459 = vunpack.c.l.b16 %v183
    %v460 = vunpack.c.h.b16 %v183
    %v461 = vunpack.c.l.b16 %v184
    %v462 = vunpack.c.h.b16 %v184
    %v463 = vunpack.c.l.b16 %v185
    %v464 = vunpack.c.h.b16 %v185
    %v465 = vunpack.c.l.b16 %v186
    %v466 = vunpack.c.h.b16 %v186
    %v467 = vunpack.c.l.b16 %v187
    %v468 = vunpack.c.h.b16 %v187
    %v469 = vunpack.c.l.b16 %v188
    %v470 = vunpack.c.h.b16 %v188
    %v471 = vunpack.c.l.b16 %v189
    %v472 = vunpack.c.h.b16 %v189
    %v473 = vunpack.c.l.b16 %v190
    %v474 = vunpack.c.h.b16 %v190
    %v475 = vunpack.c.l.b16 %v191
    %v476 = vunpack.c.h.b16 %v191
    %v477 = vunpack.c.l.b16 %v192
    %v478 = vunpack.c.h.b16 %v192
    %v479 = vunpack.c.l.b16 %v193
    %v480 = vunpack.c.h.b16 %v193
    %v481 = vunpack.c.l.b16 %v194
    %v482 = vunpack.c.h.b16 %v194
    %v483 = vunpack.c.l.b16 %v195
    %v484 = vunpack.c.h.b16 %v195
    %v485 = vunpack.c.l.b16 %v196
    %v486 = vunpack.c.h.b16 %v196
    %v487 = vunpack.c.l.b16 %v197
    %v488 = vunpack.c.h.b16 %v197
    %v489 = vunpack.c.l.b16 %v198
    %v490 = vunpack.c.h.b16 %v198
    %v491 = vunpack.c.l.b16 %v199
    %v492 = vunpack.c.h.b16 %v199
    %v493 = vunpack.c.l.b16 %v200
    %v494 = vunpack.c.h.b16 %v200
    %v495 = vunpack.c.l.b16 %v201
    %v496 = vunpack.c.h.b16 %v201
    %v497 = vunpack.c.l.b16 %v202
    %v498 = vunpack.c.h.b16 %v202
    %v499 = vunpack.c.l.b16 %v203
    %v500 = vunpack.c.h.b16 %v203
    %v501 = vunpack.c.l.b16 %v204
    %v502 = vunpack.c.h.b16 %v204
    %v503 = vunpack.c.l.b16 %v205
    %v504 = vunpack.c.h.b16 %v205
    %v505 = vunpack.c.l.b16 %v206
    %v506 = vunpack.c.h.b16 %v206
    %v507 = vunpack.c.l.b16 %v207
    %v508 = vunpack.c.h.b16 %v207
    %v509 = vunpack.c.l.b16 %v208
    %v510 = vunpack.c.h.b16 %v208
    %v511 = vunpack.c.l.b16 %v209
    %v512 = vunpack.c.h.b16 %v209
    %v513 = vunpack.c.l.b16 %v210
    %v514 = vunpack.c.h.b16 %v210
    %v515 = vunpack.c.l.b16 %v211
    %v516 = vunpack.c.h.b16 %v211
    %v517 = vunpack.c.l.b16 %v212
    %v518 = vunpack.c.h.b16 %v212
    %v519 = vunpack.c.l.b16 %v213
    %v520 = vunpack.c.h.b16 %v213
    %v521 = vunpack.c.l.b16 %v214
    %v522 = vunpack.c.h.b16 %v214
    %v523 = vunpack.c.l.b16 %v215
    %v524 = vunpack.c.h.b16 %v215
    %v525 = vunpack.c.l.b16 %v216
    %v526 = vunpack.c.h.b16 %v216
    %v527 = vunpack.c.l.b16 %v217
    %v528 = vunpack.c.h.b16 %v217
    %v529 = vunpack.c.l.b16 %v218
    %v530 = vunpack.c.h.b16 %v218
    %v531 = vunpack.c.l.b16 %v219
    %v532 = vunpack.c.h.b16 %v219
    %v533 = vunpack.c.l.b16 %v220
    %v534 = vunpack.c.h.b16 %v220
    %v535 = vunpack.c.l.b16 %v221
    %v536 = vunpack.c.h.b16 %v221
    %v537 = vunpack.c.l.b16 %v222
    %v538 = vunpack.c.h.b16 %v222
    %v539 = vunpack.c.l.b16 %v223
    %v540 = vunpack.c.h.b16 %v223
    %v541 = vunpack.c.l.b16 %v224
    %v542 = vunpack.c.h.b16 %v224
    %v543 = vunpack.c.l.b16 %v225
    %v544 = vunpack.c.h.b16 %v225
    %v545 = vunpack.c.l.b16 %v226
    %v546 = vunpack.c.h.b16 %v226
    %v547 = vunpack.c.l.b16 %v227
    %v548 = vunpack.c.h.b16 %v227
    %v549 = vunpack.c.l.b16 %v228
    %v550 = vunpack.c.h.b16 %v228
    %v551 = vunpack.c.l.b16 %v229
    %v552 = vunpack.c.h.b16 %v229
    %v553 = vunpack.c.l.b16 %v230
    %v554 = vunpack.c.h.b16 %v230
    %v555 = vpack.c.b16 %v365, %v363
    %v556 = vpack.c.b16 %v366, %v364
    %v557 = vpack.c.b16 %v369, %v367
    %v558 = vpack.c.b16 %v370, %v368
    %v559 = vpack.c.b16 %v373, %v371
    %v560 = vpack.c.b16 %v374, %v372
    %v561 = vpack.c.b16 %v377, %v375
    %v562 = vpack.c.b16 %v378, %v376
    %v563 = vpack.c.b16 %v381, %v379
    %v564 = vpack.c.b16 %v382, %v380
    %v565 = vpack.c.b16 %v385, %v383
    %v566 = vpack.c.b16 %v386, %v384
    %v567 = vpack.c.b16 %v389, %v387
    %v568 = vpack.c.b16 %v390, %v388
    %v569 = vpack.c.b16 %v393, %v391
    %v570 = vpack.c.b16 %v394, %v392
    %v571 = vpack.c.b16 %v397, %v395
    %v572 = vpack.c.b16 %v398, %v396
    %v573 = vpack.c.b16 %v401, %v399
    %v574 = vpack.c.b16 %v402, %v400
    %v575 = vpack.c.b16 %v405, %v403
    %v576 = vpack.c.b16 %v406, %v404
    %v577 = vpack.c.b16 %v409, %v407
    %v578 = vpack.c.b16 %v410, %v408
    %v579 = vpack.c.b16 %v413, %v411
    %v580 = vpack.c.b16 %v414, %v412
    %v581 = vpack.c.b16 %v417, %v415
    %v582 = vpack.c.b16 %v418, %v416
    %v583 = vpack.c.b16 %v421, %v419
    %v584 = vpack.c.b16 %v422, %v420
    %v585 = vpack.c.b16 %v425, %v423
    %v586 = vpack.c.b16 %v426, %v424
    %v587 = vpack.c.b16 %v429, %v427
    %v588 = vpack.c.b16 %v430, %v428
    %v589 = vpack.c.b16 %v433, %v431
    %v590 = vpack.c.b16 %v434, %v432
    %v591 = vpack.c.b16 %v437, %v435
    %v592 = vpack.c.b16 %v438, %v436
    %v593 = vpack.c.b16 %v441, %v439
    %v594 = vpack.c.b16 %v442, %v440
    %v595 = vpack.c.b16 %v445, %v443
    %v596 = vpack.c.b16 %v446, %v444
    %v597 = vpack.c.b16 %v449, %v447
    %v598 = vpack.c.b16 %v450, %v448
    %v599 = vpack.c.b16 %v453, %v451
    %v600 = vpack.c.b16 %v454, %v452
    %v601 = vpack.c.b16 %v457, %v455
    %v602 = vpack.c.b16 %v458, %v456
    %v603 = vpack.c.b16 %v461, %v459
    %v604 = vpack.c.b16 %v462, %v460
    %v605 = vpack.c.b16 %v465, %v463
    %v606 = vpack.c.b16 %v466, %v464
    %v607 = vpack.c.b16 %v469, %v467
    %v608 = vpack.c.b16 %v470, %v468
    %v609 = vpack.c.b16 %v473, %v471
    %v610 = vpack.c.b16 %v474, %v472
    %v611 = vpack.c.b16 %v477, %v475
    %v612 = vpack.c.b16 %v478, %v476
    %v613 = vpack.c.b16 %v481, %v479
    %v614 = vpack.c.b16 %v482, %v480
    %v615 = vpack.c.b16 %v485, %v483
    %v616 = vpack.c.b16 %v486, %v484
    %v617 = vpack.c.b16 %v489, %v487
    %v618 = vpack.c.b16 %v490, %v488
    %v619 = vpack.c.b16 %v493, %v491
    %v620 = vpack.c.b16 %v494, %v492
    %v621 = vpack.c.b16 %v497, %v495
    %v622 = vpack.c.b16 %v498, %v496
    %v623 = vpack.c.b16 %v501, %v499
    %v624 = vpack.c.b16 %v502, %v500
    %v625 = vpack.c.b16 %v505, %v503
    %v626 = vpack.c.b16 %v506, %v504
    %v627 = vpack.c.b16 %v509, %v507
    %v628 = vpack.c.b16 %v510, %v508
    %v629 = vpack.c.b16 %v513, %v511
    %v630 = vpack.c.b16 %v514, %v512
    %v631 = vpack.c.b16 %v517, %v515
    %v632 = vpack.c.b16 %v518, %v516
    %v633 = vpack.c.b16 %v521, %v519
    %v634 = vpack.c.b16 %v522, %v520
    %v635 = vpack.c.b16 %v525, %v523
    %v636 = vpack.c.b16 %v526, %v524
    %v637 = vpack.c.b16 %v529, %v527
    %v638 = vpack.c.b16 %v530, %v528
    %v639 = vpack.c.b16 %v533, %v531
    %v640 = vpack.c.b16 %v534, %v532
    %v641 = vpack.c.b16 %v537, %v535
    %v642 = vpack.c.b16 %v538, %v536
    %v643 = vpack.c.b16 %v541, %v539
    %v644 = vpack.c.b16 %v542, %v540
    %v645 = vpack.c.b16 %v545, %v543
    %v646 = vpack.c.b16 %v546, %v544
    %v647 = vpack.c.b16 %v549, %v547
    %v648 = vpack.c.b16 %v550, %v548
    %v649 = vpack.c.b16 %v553, %v551
    %v650 = vpack.c.b16 %v554, %v552
    %747 = vmatpush.bf16.msra.mxu0 %v569
    %748 = vmatpush.bf16.msra.mxu0 %v567
    %749 = vmatpush.bf16.msra.mxu0 %v565
    %750 = vmatpush.bf16.msra.mxu0 %v563
    %751 = vmatpush.bf16.msra.mxu0 %v561
    %752 = vmatpush.bf16.msra.mxu0 %v559
    %753 = vmatpush.bf16.msra.mxu0 %v557
    %754 = vmatpush.bf16.msra.mxu0 %v555
    %755 = vmatmul.bf16.gmra.mxu0 %v255
    %v756 = vpop.f32.mrf.mxu0
    %v757 = vadd.f32 %v233, %v756
    %v758 = vpop.f32.mrf.mxu0
    %v759 = vadd.f32 %v233, %v758
    %760 = vdwg.mxu0
    %761 = vmatpush.bf16.msra.mxu0 %v585
    %762 = vmatpush.bf16.msra.mxu0 %v583
    %763 = vmatpush.bf16.msra.mxu0 %v581
    %764 = vmatpush.bf16.msra.mxu0 %v579
    %765 = vmatpush.bf16.msra.mxu0 %v577
    %766 = vmatpush.bf16.msra.mxu0 %v575
    %767 = vmatpush.bf16.msra.mxu0 %v573
    %768 = vmatpush.bf16.msra.mxu0 %v571
    %769 = vmatmul.bf16.gmra.mxu0 %v256
    %v770 = vpop.f32.mrf.mxu0
    %v771 = vadd.f32 %v757, %v770
    %v772 = vpop.f32.mrf.mxu0
    %v773 = vadd.f32 %v759, %v772
    %774 = vdwg.mxu0
    %775 = vmatpush.bf16.msra.mxu0 %v601
    %776 = vmatpush.bf16.msra.mxu0 %v599
    %777 = vmatpush.bf16.msra.mxu0 %v597
    %778 = vmatpush.bf16.msra.mxu0 %v595
    %779 = vmatpush.bf16.msra.mxu0 %v593
    %780 = vmatpush.bf16.msra.mxu0 %v591
    %781 = vmatpush.bf16.msra.mxu0 %v589
    %782 = vmatpush.bf16.msra.mxu0 %v587
    %783 = vmatmul.bf16.gmra.mxu0 %v257
    %v784 = vpop.f32.mrf.mxu0
    %v785 = vadd.f32 %v771, %v784
    %v786 = vpop.f32.mrf.mxu0
    %v787 = vadd.f32 %v773, %v786
    %788 = vdwg.mxu0
    %789 = vmatpush.bf16.msra.mxu0 %v617
    %790 = vmatpush.bf16.msra.mxu0 %v615
    %791 = vmatpush.bf16.msra.mxu0 %v613
    %792 = vmatpush.bf16.msra.mxu0 %v611
    %793 = vmatpush.bf16.msra.mxu0 %v609
    %794 = vmatpush.bf16.msra.mxu0 %v607
    %795 = vmatpush.bf16.msra.mxu0 %v605
    %796 = vmatpush.bf16.msra.mxu0 %v603
    %797 = vmatmul.bf16.gmra.mxu0 %v258
    %v798 = vpop.f32.mrf.mxu0
    %v799 = vadd.f32 %v785, %v798
    %v800 = vpop.f32.mrf.mxu0
    %v801 = vadd.f32 %v787, %v800
    %802 = vdwg.mxu0
    %803 = vmatpush.bf16.msra.mxu0 %v633
    %804 = vmatpush.bf16.msra.mxu0 %v631
    %805 = vmatpush.bf16.msra.mxu0 %v629
    %806 = vmatpush.bf16.msra.mxu0 %v627
    %807 = vmatpush.bf16.msra.mxu0 %v625
    %808 = vmatpush.bf16.msra.mxu0 %v623
    %809 = vmatpush.bf16.msra.mxu0 %v621
    %810 = vmatpush.bf16.msra.mxu0 %v619
    %811 = vmatmul.bf16.gmra.mxu0 %v259
    %v812 = vpop.f32.mrf.mxu0
    %v813 = vadd.f32 %v799, %v812
    %v814 = vpop.f32.mrf.mxu0
    %v815 = vadd.f32 %v801, %v814
    %816 = vdwg.mxu0
    %817 = vmatpush.bf16.msra.mxu0 %v649
    %818 = vmatpush.bf16.msra.mxu0 %v647
    %819 = vmatpush.bf16.msra.mxu0 %v645
    %820 = vmatpush.bf16.msra.mxu0 %v643
    %821 = vmatpush.bf16.msra.mxu0 %v641
    %822 = vmatpush.bf16.msra.mxu0 %v639
    %823 = vmatpush.bf16.msra.mxu0 %v637
    %824 = vmatpush.bf16.msra.mxu0 %v635
    %825 = vmatmul.bf16.gmra.mxu0 %v260
    %v826 = vpop.f32.mrf.mxu0
    %v827 = vadd.f32 %v813, %v826
    %v828 = vpop.f32.mrf.mxu0
    %v829 = vadd.f32 %v815, %v828
    %830 = vdwg.mxu0
    %831 = vmatpush.bf16.msra.mxu0 %v570
    %832 = vmatpush.bf16.msra.mxu0 %v568
    %833 = vmatpush.bf16.msra.mxu0 %v566
    %834 = vmatpush.bf16.msra.mxu0 %v564
    %835 = vmatpush.bf16.msra.mxu0 %v562
    %836 = vmatpush.bf16.msra.mxu0 %v560
    %837 = vmatpush.bf16.msra.mxu0 %v558
    %838 = vmatpush.bf16.msra.mxu0 %v556
    %839 = vmatmul.bf16.gmra.mxu0 %v255
    %v840 = vpop.f32.mrf.mxu0
    %v841 = vadd.f32 %v234, %v840
    %v842 = vpop.f32.mrf.mxu0
    %v843 = vadd.f32 %v234, %v842
    %844 = vdwg.mxu0
    %845 = vmatpush.bf16.msra.mxu0 %v586
    %846 = vmatpush.bf16.msra.mxu0 %v584
    %847 = vmatpush.bf16.msra.mxu0 %v582
    %848 = vmatpush.bf16.msra.mxu0 %v580
    %849 = vmatpush.bf16.msra.mxu0 %v578
    %850 = vmatpush.bf16.msra.mxu0 %v576
    %851 = vmatpush.bf16.msra.mxu0 %v574
    %852 = vmatpush.bf16.msra.mxu0 %v572
    %853 = vmatmul.bf16.gmra.mxu0 %v256
    %v854 = vpop.f32.mrf.mxu0
    %v855 = vadd.f32 %v841, %v854
    %v856 = vpop.f32.mrf.mxu0
    %v857 = vadd.f32 %v843, %v856
    %858 = vdwg.mxu0
    %859 = vmatpush.bf16.msra.mxu0 %v602
    %860 = vmatpush.bf16.msra.mxu0 %v600
    %861 = vmatpush.bf16.msra.mxu0 %v598
    %862 = vmatpush.bf16.msra.mxu0 %v596
    %863 = vmatpush.bf16.msra.mxu0 %v594
    %864 = vmatpush.bf16.msra.mxu0 %v592
    %865 = vmatpush.bf16.msra.mxu0 %v590
    %866 = vmatpush.bf16.msra.mxu0 %v588
    %867 = vmatmul.bf16.gmra.mxu0 %v257
    %v868 = vpop.f32.mrf.mxu0
    %v869 = vadd.f32 %v855, %v868
    %v870 = vpop.f32.mrf.mxu0
    %v871 = vadd.f32 %v857, %v870
    %872 = vdwg.mxu0
    %873 = vmatpush.bf16.msra.mxu0 %v618
    %874 = vmatpush.bf16.msra.mxu0 %v616
    %875 = vmatpush.bf16.msra.mxu0 %v614
    %876 = vmatpush.bf16.msra.mxu0 %v612
    %877 = vmatpush.bf16.msra.mxu0 %v610
    %878 = vmatpush.bf16.msra.mxu0 %v608
    %879 = vmatpush.bf16.msra.mxu0 %v606
    %880 = vmatpush.bf16.msra.mxu0 %v604
    %881 = vmatmul.bf16.gmra.mxu0 %v258
    %v882 = vpop.f32.mrf.mxu0
    %v883 = vadd.f32 %v869, %v882
    %v884 = vpop.f32.mrf.mxu0
    %v885 = vadd.f32 %v871, %v884
    %886 = vdwg.mxu0
    %887 = vmatpush.bf16.msra.mxu0 %v634
    %888 = vmatpush.bf16.msra.mxu0 %v632
    %889 = vmatpush.bf16.msra.mxu0 %v630
    %890 = vmatpush.bf16.msra.mxu0 %v628
    %891 = vmatpush.bf16.msra.mxu0 %v626
    %892 = vmatpush.bf16.msra.mxu0 %v624
    %893 = vmatpush.bf16.msra.mxu0 %v622
    %894 = vmatpush.bf16.msra.mxu0 %v620
    %895 = vmatmul.bf16.gmra.mxu0 %v259
    %v896 = vpop.f32.mrf.mxu0
    %v897 = vadd.f32 %v883, %v896
    %v898 = vpop.f32.mrf.mxu0
    %v899 = vadd.f32 %v885, %v898
    %900 = vdwg.mxu0
    %901 = vmatpush.bf16.msra.mxu0 %v650
    %902 = vmatpush.bf16.msra.mxu0 %v648
    %903 = vmatpush.bf16.msra.mxu0 %v646
    %904 = vmatpush.bf16.msra.mxu0 %v644
    %905 = vmatpush.bf16.msra.mxu0 %v642
    %906 = vmatpush.bf16.msra.mxu0 %v640
    %907 = vmatpush.bf16.msra.mxu0 %v638
    %908 = vmatpush.bf16.msra.mxu0 %v636
    %909 = vmatmul.bf16.gmra.mxu0 %v260
    %v910 = vpop.f32.mrf.mxu0
    %v911 = vadd.f32 %v897, %v910
    %v912 = vpop.f32.mrf.mxu0
    %v913 = vadd.f32 %v899, %v912
    %914 = vdwg.mxu0
    %v915 = vld [vmem:[%s3] sm:$0x3]
    %v916 = vld [vmem:[#allocation8] sm:$0x3]
    %v917 = vadd.f32 %v827, %v911
    %918 = vadd.xlane.f32.xlu0 %v917
    %v919 = vpop.xlane.xlu0 %918
    %v920 = vadd.f32 %v829, %v913
    %921 = vadd.xlane.f32.xlu0 %v920
    %v922 = vpop.xlane.xlu0 %921
    %v923 = vmul.f32 %v827, %v827
    %v924 = vmul.f32 %v911, %v911
    %v925 = vmul.f32 %v829, %v829
    %v926 = vmul.f32 %v913, %v913
    %v927 = vadd.f32 %v923, %v924
    %928 = vadd.xlane.f32.xlu0 %v927
    %v929 = vpop.xlane.xlu0 %928
    %v930 = vadd.f32 %v925, %v926
    %931 = vadd.xlane.f32.xlu0 %v930
    %v932 = vpop.xlane.xlu0 %931
    %v933 = vmul.f32 %v919, 0.00390625
    %v934 = vmul.f32 %v922, 0.00390625
    %v935 = vmul.f32 %v929, 0.00390625
    %v936 = vmul.f32 %v932, 0.00390625
    %v937 = vmul.f32 %v933, %v933
    %v938 = vmul.f32 %v934, %v934
    %v939 = vsub.f32 %v935, %v937
    %v940 = vsub.f32 %v936, %v938
    %v941 = vmax.f32 %v939, 0.0
    %v942 = vmax.f32 %v940, 0.0
    %v943 = vadd.f32 %v941, 1e-05
    %v944 = vadd.f32 %v942, 1e-05
    %v945 = vrsqrt.pop %v943
    %v946 = vmul.f32 %v945, %v943
    %v947 = vmul.f32 %v946, %v945
    %v948 = vmul.f32 0.5, %v947
    %v949 = vsub.f32 1.5, %v948
    %v950 = vmul.f32 %v945, %v949
    %vm951 = vweird.f32 %v943
    %vm952 = vweird.f32 %v945
    %vm953 = vmor %vm951, %vm952
    %v954 = vsel %vm953, %v945, %v950
    %v955 = vrsqrt.pop %v944
    %v956 = vmul.f32 %v955, %v944
    %v957 = vmul.f32 %v956, %v955
    %v958 = vmul.f32 0.5, %v957
    %v959 = vsub.f32 1.5, %v958
    %v960 = vmul.f32 %v955, %v959
    %vm961 = vweird.f32 %v944
    %vm962 = vweird.f32 %v955
    %vm963 = vmor %vm961, %vm962
    %v964 = vsel %vm963, %v955, %v960
    %v966 = vperm.slane %v915, 0
    %v967 = vperm.slane %v915, 1
    %v970 = vmul.f32 %v966, %v954
    %v971 = vmul.f32 %v967, %v954
    %v972 = vmul.f32 %v966, %v964
    %v973 = vmul.f32 %v967, %v964
    %v974 = vmul.f32 %v827, %v970
    %v975 = vmul.f32 %v911, %v971
    %v976 = vmul.f32 %v829, %v972
    %v977 = vmul.f32 %v913, %v973
    %v978 = vmul.f32 %v933, %v970
    %v979 = vmul.f32 %v933, %v971
    %v980 = vmul.f32 %v934, %v972
    %v981 = vmul.f32 %v934, %v973
    %v983 = vperm.slane %v916, 0
    %v984 = vperm.slane %v916, 1
    %v987 = vsub.f32 %v983, %v978
    %v988 = vsub.f32 %v984, %v979
    %v989 = vsub.f32 %v983, %v980
    %v990 = vsub.f32 %v984, %v981
    %v991 = vadd.f32 %v974, %v987
    %v992 = vadd.f32 %v975, %v988
    %v993 = vadd.f32 %v976, %v989
    %v994 = vadd.f32 %v977, %v990
    %v995 = vmax.f32 %v991, 0.0
    %v996 = vmax.f32 %v992, 0.0
    %v997 = vmax.f32 %v993, 0.0
    %v998 = vmax.f32 %v994, 0.0
    %v999 = vpack.c.bf16 %v997, %v995
    %v1000 = vpack.c.bf16 %v998, %v996
    %v1001 = vld [vmem:[#allocation10] sm:$0xf]
    %v1002 = vld [vmem:[#allocation10 + $0x4] sm:$0xf]
    %v1003 = vld [vmem:[#allocation10 + $0x8] sm:$0xf]
    %v1004 = vld [vmem:[#allocation10 + $0xc] sm:$0xf]
    %v1005 = vld [vmem:[#allocation10 + $0x10] sm:$0xf]
    %v1006 = vld [vmem:[#allocation10 + $0x14] sm:$0xf]
    %v1007 = vld [vmem:[#allocation10 + $0x18] sm:$0xf]
    %v1008 = vld [vmem:[#allocation10 + $0x1c] sm:$0xf]
    %v1009 = vld [vmem:[#allocation10 + $0x20] sm:$0xf]
    %v1010 = vld [vmem:[#allocation10 + $0x24] sm:$0xf]
    %v1011 = vld [vmem:[#allocation10 + $0x28] sm:$0xf]
    %v1012 = vld [vmem:[#allocation10 + $0x2c] sm:$0xf]
    %v1013 = vld [vmem:[#allocation10 + $0x30] sm:$0xf]
    %v1014 = vld [vmem:[#allocation10 + $0x34] sm:$0xf]
    %v1015 = vld [vmem:[#allocation10 + $0x38] sm:$0xf]
    %v1016 = vld [vmem:[#allocation10 + $0x3c] sm:$0xf]
    %v1017 = vld [vmem:[#allocation10 + $0x40] sm:$0xf]
    %v1018 = vld [vmem:[#allocation10 + $0x44] sm:$0xf]
    %v1019 = vld [vmem:[#allocation10 + $0x48] sm:$0xf]
    %v1020 = vld [vmem:[#allocation10 + $0x4c] sm:$0xf]
    %v1021 = vld [vmem:[#allocation10 + $0x50] sm:$0xf]
    %v1022 = vld [vmem:[#allocation10 + $0x54] sm:$0xf]
    %v1023 = vld [vmem:[#allocation10 + $0x58] sm:$0xf]
    %v1024 = vld [vmem:[#allocation10 + $0x5c] sm:$0xf]
    %v1025 = vld [vmem:[#allocation10 + $0x60] sm:$0xf]
    %v1026 = vld [vmem:[#allocation10 + $0x64] sm:$0xf]
    %v1027 = vld [vmem:[#allocation10 + $0x68] sm:$0xf]
    %v1028 = vld [vmem:[#allocation10 + $0x6c] sm:$0xf]
    %v1029 = vld [vmem:[#allocation10 + $0x70] sm:$0xf]
    %v1030 = vld [vmem:[#allocation10 + $0x74] sm:$0xf]
    %v1031 = vld [vmem:[#allocation10 + $0x78] sm:$0xf]
    %v1032 = vld [vmem:[#allocation10 + $0x7c] sm:$0xf]
    %v1033 = vld [vmem:[%s6] sm:$0x1]
    %v1035 = vperm.slane %v1033, 0
    %v1069 = vunpack.c.l.b16 %v1001
    %v1070 = vunpack.c.l.b16 %v1002
    %v1071 = vunpack.c.l.b16 %v1003
    %v1072 = vunpack.c.l.b16 %v1004
    %v1073 = vunpack.c.l.b16 %v1005
    %v1074 = vunpack.c.l.b16 %v1006
    %v1075 = vunpack.c.l.b16 %v1007
    %v1076 = vunpack.c.l.b16 %v1008
    %v1077 = vunpack.c.l.b16 %v1009
    %v1078 = vunpack.c.l.b16 %v1010
    %v1079 = vunpack.c.l.b16 %v1011
    %v1080 = vunpack.c.l.b16 %v1012
    %v1081 = vunpack.c.l.b16 %v1013
    %v1082 = vunpack.c.l.b16 %v1014
    %v1083 = vunpack.c.l.b16 %v1015
    %v1084 = vunpack.c.l.b16 %v1016
    %v1085 = vunpack.c.l.b16 %v1017
    %v1086 = vunpack.c.l.b16 %v1018
    %v1087 = vunpack.c.l.b16 %v1019
    %v1088 = vunpack.c.l.b16 %v1020
    %v1089 = vunpack.c.l.b16 %v1021
    %v1090 = vunpack.c.l.b16 %v1022
    %v1091 = vunpack.c.l.b16 %v1023
    %v1092 = vunpack.c.l.b16 %v1024
    %v1093 = vunpack.c.l.b16 %v1025
    %v1094 = vunpack.c.l.b16 %v1026
    %v1095 = vunpack.c.l.b16 %v1027
    %v1096 = vunpack.c.l.b16 %v1028
    %v1097 = vunpack.c.l.b16 %v1029
    %v1098 = vunpack.c.l.b16 %v1030
    %v1099 = vunpack.c.l.b16 %v1031
    %v1100 = vunpack.c.l.b16 %v1032
    %v1101 = vpack.c.b16 %v1070, %v1069
    %v1102 = vpack.c.b16 %v1072, %v1071
    %v1103 = vpack.c.b16 %v1074, %v1073
    %v1104 = vpack.c.b16 %v1076, %v1075
    %v1105 = vpack.c.b16 %v1078, %v1077
    %v1106 = vpack.c.b16 %v1080, %v1079
    %v1107 = vpack.c.b16 %v1082, %v1081
    %v1108 = vpack.c.b16 %v1084, %v1083
    %v1109 = vpack.c.b16 %v1086, %v1085
    %v1110 = vpack.c.b16 %v1088, %v1087
    %v1111 = vpack.c.b16 %v1090, %v1089
    %v1112 = vpack.c.b16 %v1092, %v1091
    %v1113 = vpack.c.b16 %v1094, %v1093
    %v1114 = vpack.c.b16 %v1096, %v1095
    %v1115 = vpack.c.b16 %v1098, %v1097
    %v1116 = vpack.c.b16 %v1100, %v1099
    %1133 = vmatpush.bf16.msra.mxu0 %v1108
    %1134 = vmatpush.bf16.msra.mxu0 %v1107
    %1135 = vmatpush.bf16.msra.mxu0 %v1106
    %1136 = vmatpush.bf16.msra.mxu0 %v1105
    %1137 = vmatpush.bf16.msra.mxu0 %v1104
    %1138 = vmatpush.bf16.msra.mxu0 %v1103
    %1139 = vmatpush.bf16.msra.mxu0 %v1102
    %1140 = vmatpush.bf16.msra.mxu0 %v1101
    %1141 = vmatmul.bf16.gmra.mxu0 %v999
    %v1142 = vpop.f32.mrf.mxu0
    %v1143 = vadd.f32 %v1035, %v1142
    %v1144 = vpop.f32.mrf.mxu0
    %v1145 = vadd.f32 %v1035, %v1144
    %1146 = vdwg.mxu0
    %1147 = vmatpush.bf16.msra.mxu0 %v1116
    %1148 = vmatpush.bf16.msra.mxu0 %v1115
    %1149 = vmatpush.bf16.msra.mxu0 %v1114
    %1150 = vmatpush.bf16.msra.mxu0 %v1113
    %1151 = vmatpush.bf16.msra.mxu0 %v1112
    %1152 = vmatpush.bf16.msra.mxu0 %v1111
    %1153 = vmatpush.bf16.msra.mxu0 %v1110
    %1154 = vmatpush.bf16.msra.mxu0 %v1109
    %1155 = vmatmul.bf16.gmra.mxu0 %v1000
    %v1156 = vpop.f32.mrf.mxu0
    %v1157 = vadd.f32 %v1143, %v1156
    %v1158 = vpop.f32.mrf.mxu0
    %v1159 = vadd.f32 %v1145, %v1158
    %1160 = vdwg.mxu0
    %v1161 = vld [vmem:[%s7] sm:$0x1]
    %v1162 = vld [vmem:[%s8] sm:$0x1]
    %1163 = vadd.xlane.f32.xlu0 %v1157
    %v1164 = vpop.xlane.xlu0 %1163
    %1165 = vadd.xlane.f32.xlu0 %v1159
    %v1166 = vpop.xlane.xlu0 %1165
    %v1167 = vmul.f32 %v1157, %v1157
    %v1168 = vmul.f32 %v1159, %v1159
    %1169 = vadd.xlane.f32.xlu0 %v1167
    %v1170 = vpop.xlane.xlu0 %1169
    %1171 = vadd.xlane.f32.xlu0 %v1168
    %v1172 = vpop.xlane.xlu0 %1171
    %v1173 = vmul.f32 %v1164, 0.0078125
    %v1174 = vmul.f32 %v1166, 0.0078125
    %v1175 = vmul.f32 %v1170, 0.0078125
    %v1176 = vmul.f32 %v1172, 0.0078125
    %v1177 = vmul.f32 %v1173, %v1173
    %v1178 = vmul.f32 %v1174, %v1174
    %v1179 = vsub.f32 %v1175, %v1177
    %v1180 = vsub.f32 %v1176, %v1178
    %v1181 = vmax.f32 %v1179, 0.0
    %v1182 = vmax.f32 %v1180, 0.0
    %v1183 = vadd.f32 %v1181, 1e-05
    %v1184 = vadd.f32 %v1182, 1e-05
    %v1185 = vrsqrt.pop %v1183
    %v1186 = vmul.f32 %v1185, %v1183
    %v1187 = vmul.f32 %v1186, %v1185
    %v1188 = vmul.f32 0.5, %v1187
    %v1189 = vsub.f32 1.5, %v1188
    %v1190 = vmul.f32 %v1185, %v1189
    %vm1191 = vweird.f32 %v1183
    %vm1192 = vweird.f32 %v1185
    %vm1193 = vmor %vm1191, %vm1192
    %v1194 = vsel %vm1193, %v1185, %v1190
    %v1195 = vrsqrt.pop %v1184
    %v1196 = vmul.f32 %v1195, %v1184
    %v1197 = vmul.f32 %v1196, %v1195
    %v1198 = vmul.f32 0.5, %v1197
    %v1199 = vsub.f32 1.5, %v1198
    %v1200 = vmul.f32 %v1195, %v1199
    %vm1201 = vweird.f32 %v1184
    %vm1202 = vweird.f32 %v1195
    %vm1203 = vmor %vm1201, %vm1202
    %v1204 = vsel %vm1203, %v1195, %v1200
    %v1206 = vperm.slane %v1161, 0
    %v1208 = vmul.f32 %v1206, %v1194
    %v1209 = vmul.f32 %v1206, %v1204
    %v1210 = vmul.f32 %v1157, %v1208
    %v1211 = vmul.f32 %v1159, %v1209
    %v1212 = vmul.f32 %v1173, %v1208
    %v1213 = vmul.f32 %v1174, %v1209
    %v1215 = vperm.slane %v1162, 0
    %v1217 = vsub.f32 %v1215, %v1212
    %v1218 = vsub.f32 %v1215, %v1213
    %v1219 = vadd.f32 %v1210, %v1217
    %v1220 = vadd.f32 %v1211, %v1218
    %v1221 = vmax.f32 %v1219, 0.0
    %v1222 = vmax.f32 %v1220, 0.0
    %v1223 = vpack.c.bf16 %v1222, %v1221
    %v1224 = vld [vmem:[#allocation11] sm:$0xf]
    %v1225 = vld [vmem:[#allocation11 + $0x4] sm:$0xf]
    %v1226 = vld [vmem:[#allocation11 + $0x8] sm:$0xf]
    %v1227 = vld [vmem:[#allocation11 + $0xc] sm:$0xf]
    %v1228 = vld [vmem:[#allocation11 + $0x10] sm:$0xf]
    %v1229 = vld [vmem:[#allocation11 + $0x14] sm:$0xf]
    %v1230 = vld [vmem:[#allocation11 + $0x18] sm:$0xf]
    %v1231 = vld [vmem:[#allocation11 + $0x1c] sm:$0xf]
    %v1232 = vld [vmem:[#allocation11 + $0x20] sm:$0xf]
    %v1233 = vld [vmem:[#allocation11 + $0x24] sm:$0xf]
    %v1234 = vld [vmem:[#allocation11 + $0x28] sm:$0xf]
    %v1235 = vld [vmem:[#allocation11 + $0x2c] sm:$0xf]
    %v1236 = vld [vmem:[#allocation11 + $0x30] sm:$0xf]
    %v1237 = vld [vmem:[#allocation11 + $0x34] sm:$0xf]
    %v1238 = vld [vmem:[#allocation11 + $0x38] sm:$0xf]
    %v1239 = vld [vmem:[#allocation11 + $0x3c] sm:$0xf]
    %v1240 = vld [vmem:[%s10] sm:$0x1]
    %v1242 = vperm.slane %v1240, 0
    %v1260 = vunpack.c.l.b16 %v1224
    %v1261 = vunpack.c.l.b16 %v1225
    %v1262 = vunpack.c.l.b16 %v1226
    %v1263 = vunpack.c.l.b16 %v1227
    %v1264 = vunpack.c.l.b16 %v1228
    %v1265 = vunpack.c.l.b16 %v1229
    %v1266 = vunpack.c.l.b16 %v1230
    %v1267 = vunpack.c.l.b16 %v1231
    %v1268 = vunpack.c.l.b16 %v1232
    %v1269 = vunpack.c.l.b16 %v1233
    %v1270 = vunpack.c.l.b16 %v1234
    %v1271 = vunpack.c.l.b16 %v1235
    %v1272 = vunpack.c.l.b16 %v1236
    %v1273 = vunpack.c.l.b16 %v1237
    %v1274 = vunpack.c.l.b16 %v1238
    %v1275 = vunpack.c.l.b16 %v1239
    %v1276 = vpack.c.b16 %v1261, %v1260
    %v1277 = vpack.c.b16 %v1263, %v1262
    %v1278 = vpack.c.b16 %v1265, %v1264
    %v1279 = vpack.c.b16 %v1267, %v1266
    %v1280 = vpack.c.b16 %v1269, %v1268
    %v1281 = vpack.c.b16 %v1271, %v1270
    %v1282 = vpack.c.b16 %v1273, %v1272
    %v1283 = vpack.c.b16 %v1275, %v1274
    %1292 = vmatpush.bf16.msra.mxu0 %v1283
    %1293 = vmatpush.bf16.msra.mxu0 %v1282
    %1294 = vmatpush.bf16.msra.mxu0 %v1281
    %1295 = vmatpush.bf16.msra.mxu0 %v1280
    %1296 = vmatpush.bf16.msra.mxu0 %v1279
    %1297 = vmatpush.bf16.msra.mxu0 %v1278
    %1298 = vmatpush.bf16.msra.mxu0 %v1277
    %1299 = vmatpush.bf16.msra.mxu0 %v1276
    %1300 = vmatmul.bf16.gmra.mxu0 %v1223
    %v1301 = vpop.f32.mrf.mxu0
    %v1302 = vadd.f32 %v1242, %v1301
    %v1303 = vpop.f32.mrf.mxu0
    %v1304 = vadd.f32 %v1242, %v1303
    %1305 = vdwg.mxu0
    %1306 = vmax.xlane.f32.xlu0 %v1302
    %v1307 = vpop.xlane.xlu0 %1306
    %1308 = vmax.xlane.f32.xlu0 %v1304
    %v1309 = vpop.xlane.xlu0 %1308
    %v1310 = vsub.f32 %v1302, %v1307
    %v1311 = vsub.f32 %v1304, %v1309
    %v1312 = vmul.f32 %v1310, 1.442695
    %v1313 = vpow.pop %v1312
    %v1314 = vmul.f32 %v1311, 1.442695
    %v1315 = vpow.pop %v1314
    %1316 = vadd.xlane.f32.xlu0 %v1313
    %v1317 = vpop.xlane.xlu0 %1316
    %1318 = vadd.xlane.f32.xlu0 %v1315
    %v1319 = vpop.xlane.xlu0 %1318
    %v1320 = vrcp.pop %v1317
    %v1321 = vrcp.pop %v1319
    %v1322 = vmul.f32 %v1313, %v1320
    %v1323 = vmul.f32 %v1315, %v1321
    %v1324 = vpack.c.bf16 %v1322, %v1322
    %v1325 = vpack.c.bf16 %v1323, %v1323
    %1326 = vst [vmem:[#allocation13] sm:$0xf] %v1324
    %1327 = vst [vmem:[#allocation13 + $0x4] sm:$0xf] %v1325
    // Predicated region
    $region70: #{tpu_custom_call.1} parent=1 // pred_check
      _
    $region71: #{tpu_custom_call.1} parent=1 // pred_check_branch
      %1329 = sbr.rel (0) target = $region73
    $region72: #{tpu_custom_call.1} parent=1 // pred_region
      %1331 = vsyncadd [#allocation4], 0
      %s1332 = sshll.u32 [#allocation13], 4
      %s1333 = int_to_ptr.vmem [resolvable:$true] %s1332
      %s1334 = sshll.u32 %s11, 4
      %s1335 = int_to_ptr.hbm [resolvable:$true] %s1334
      %1340 = dma.vmem_to_hbm [thread:$0]  %s1333, 128, %s1335, [#allocation4], 64, 64, 4
    $region73: #{tpu_custom_call.1} parent=1 // pred_fallthru
      _
    // Predicated region
    $region74: #{tpu_custom_call.1} parent=1 // pred_check
      _
    $region75: #{tpu_custom_call.1} parent=1 // pred_check_branch
      %1342 = sbr.rel (0) target = $region77
    $region76: #{tpu_custom_call.1} parent=1 // pred_region
      %1344 = dma.done [#allocation4], 128
    $region77: #{tpu_custom_call.1} parent=1 // pred_fallthru
      _
    %1345 = vsyncpa [#allocation3], 1
    %1346 = vsyncpa [#allocation6], 1
    %1347 = vsyncpa [#allocation9], 1
    %1348 = vsyncpa [#allocation12], 1
    %1349 = vsyncpa [#allocation4], 1

</llo_original>
